<compile_context>
chip_gen: v5e
topology: v5e:2x2
jax: 0.10.0
libtpu: 0.0.40
codegen_flags: <defaults>
</compile_context>

<pallas_src>
import jax
import jax.numpy as jnp
import numpy as np
from jax import lax
from jax.experimental import pallas as pl
from jax.experimental.pallas import tpu as pltpu

INPUT_SIZE = 1
HIDDEN = 20
OUTPUT_SIZE = 1

HP = 128               # padded hidden width (one 128-lane group per gate)
G4 = 4 * HP            # four gates packed along lanes: [i | f | o | g]


# ----------------------------------------------------------------------------
# Pallas kernel: whole recurrence in one invocation.
#   x_ref    : (L,)       raw input sequence (SMEM, scalar-read per step)
#   wih_ref  : (1, 4*HP)  W_ih row (input_size==1), zero-padded, gate-reordered
#   whh_ref  : (HP, 4*HP) W_hh^T, zero-padded, gate-reordered
#   bias_ref : (1, 4*HP)  b_ih + b_hh, zero-padded, gate-reordered
#   wlin_ref : (1, HP)    final linear weight row, zero-padded
#   blin_ref : (1, 1)     final linear bias
#   out_ref  : (1, 1)     prediction for the last time step
# ----------------------------------------------------------------------------
def lstm_kernel(x_ref, wih_ref, whh_ref, bias_ref, wlin_ref, blin_ref, out_ref):
    L = x_ref.shape[0]
    wih = wih_ref[...]                        # (1, 4*HP), loop-invariant
    bias = bias_ref[...]                      # (1, 4*HP), loop-invariant

    def step(t, carry):
        h, c = carry                          # (1, HP) each, loop-carried vregs
        x_t = x_ref[t]                        # scalar (SMEM) -> broadcast mul
        # gate pre-activations: x_t * W_ih_row + (b_ih+b_hh) + h @ W_hh^T
        gates = (x_t * wih + bias
                 + jnp.dot(h, whh_ref[...], preferred_element_type=jnp.float32))

        # lanes: [i | f | o | g] -> one sigmoid over 3*HP, one tanh over HP
        sig = jax.nn.sigmoid(gates[:, : 3 * HP])
        i_g = sig[:, 0 * HP:1 * HP]
        f_g = sig[:, 1 * HP:2 * HP]
        o_g = sig[:, 2 * HP:3 * HP]
        g_g = jnp.tanh(gates[:, 3 * HP:4 * HP])

        c_new = f_g * c + i_g * g_g
        h_new = o_g * jnp.tanh(c_new)
        return (h_new, c_new)

    h0 = jnp.zeros((1, HP), jnp.float32)
    c0 = jnp.zeros((1, HP), jnp.float32)
    unroll = True if L <= 32 else 8
    h, _ = lax.fori_loop(0, L, step, (h0, c0), unroll=unroll)

    # Final linear projection (hidden -> 1) on the last hidden state.
    out_ref[...] = (jnp.sum(h * wlin_ref[...], axis=-1, keepdims=True)
                    + blin_ref[...])


def lstm_forward(input_seq, params):
    """Equivalent of LSTM.forward(input_seq) -> predictions[-1], shape (1,)."""
    x = jnp.asarray(input_seq, jnp.float32).reshape(-1)      # (L,), input_size=1

    w_ih, w_hh, b_ih, b_hh, w_lin, b_lin = (
        params["w_ih"], params["w_hh"], params["b_ih"], params["b_hh"],
        params["w_lin"], params["b_lin"])

    # Pack weights into gate-reordered, zero-padded lane layout [i | f | o | g].
    # PyTorch row order is [i, f, g, o]; map lane slot -> pytorch gate index.
    order = (0, 1, 3, 2)
    wih_row = jnp.zeros((1, G4), jnp.float32)
    whh_pad = jnp.zeros((HP, G4), jnp.float32)
    b_pad = jnp.zeros((1, G4), jnp.float32)
    for slot, g in enumerate(order):
        rows = slice(g * HIDDEN, (g + 1) * HIDDEN)
        cols = slice(slot * HP, slot * HP + HIDDEN)
        wih_row = wih_row.at[0, cols].set(w_ih[rows, 0])
        whh_pad = whh_pad.at[:HIDDEN, cols].set(w_hh[rows, :].T)
        b_pad = b_pad.at[0, cols].set(b_ih[rows] + b_hh[rows])

    wlin_pad = jnp.zeros((1, HP), jnp.float32).at[0, :HIDDEN].set(w_lin[0])
    blin_pad = b_lin.reshape(1, 1).astype(jnp.float32)

    smem = pl.BlockSpec(memory_space=pltpu.MemorySpace.SMEM)
    vmem = pl.BlockSpec(memory_space=pltpu.MemorySpace.VMEM)
    out = pl.pallas_call(
        lstm_kernel,
        out_shape=jax.ShapeDtypeStruct((1, 1), jnp.float32),
        in_specs=[smem, vmem, vmem, vmem, vmem, vmem],   # whole arrays resident
        out_specs=vmem,
    )(x, wih_row, whh_pad, b_pad, wlin_pad, blin_pad)

    return out.reshape(OUTPUT_SIZE)


# ----------------------------------------------------------------------------
# Pure-JAX reference (same math, unpadded, PyTorch gate order) for sanity check.
# ----------------------------------------------------------------------------
def lstm_ref(input_seq, p):
    x = jnp.asarray(input_seq, jnp.float32).reshape(-1, INPUT_SIZE)

    def step(carry, x_t):
        h, c = carry
        gates = p["w_ih"] @ x_t + p["b_ih"] + p["w_hh"] @ h + p["b_hh"]
        i, f, g, o = jnp.split(gates, 4)
        i, f, o = jax.nn.sigmoid(i), jax.nn.sigmoid(f), jax.nn.sigmoid(o)
        g = jnp.tanh(g)
        c = f * c + i * g
        h = o * jnp.tanh(c)
        return (h, c), h

    (h, _), _ = lax.scan(step, (jnp.zeros(HIDDEN), jnp.zeros(HIDDEN)), x)
    return p["w_lin"] @ h + p["b_lin"]


def init_params(key):
    k = 1.0 / np.sqrt(HIDDEN)
    ks = jax.random.split(key, 6)
    u = lambda kk, shape: jax.random.uniform(kk, shape, jnp.float32, -k, k)
    return {
        "w_ih": u(ks[0], (4 * HIDDEN, INPUT_SIZE)),
        "w_hh": u(ks[1], (4 * HIDDEN, HIDDEN)),
        "b_ih": u(ks[2], (4 * HIDDEN,)),
        "b_hh": u(ks[3], (4 * HIDDEN,)),
        "w_lin": u(ks[4], (OUTPUT_SIZE, HIDDEN)),
        "b_lin": u(ks[5], (OUTPUT_SIZE,)),
    }


if __name__ == "__main__":
    # TODO(synk): the PyTorch module keeps self.hidden_cell across forward()
    # calls; this kernel implements one forward pass from (h0, c0) = 0, which
    # matches the module's initial state.
    key = jax.random.PRNGKey(0)
    pkey, xkey = jax.random.split(key)
    params = init_params(pkey)

    SEQ = 8
    input_seq = jax.random.normal(xkey, (SEQ,), jnp.float32)

    pred = lstm_forward(input_seq, params)
    jax.block_until_ready(pred)

    ref = lstm_ref(input_seq, params)
    np.testing.assert_allclose(np.asarray(pred), np.asarray(ref),
                               rtol=1e-4, atol=1e-4)
    print("KERNEL_OK")
</pallas_src>

<mosaic_0001>
module attributes {stable_mosaic.version = 11 : i64} {
  func.func @lstm_kernel(%arg0: memref<8xf32, #tpu.memory_space<smem>>, %arg1: memref<1x512xf32, #tpu.memory_space<vmem>>, %arg2: memref<128x512xf32, #tpu.memory_space<vmem>>, %arg3: memref<1x512xf32, #tpu.memory_space<vmem>>, %arg4: memref<1x128xf32, #tpu.memory_space<vmem>>, %arg5: memref<1x1xf32, #tpu.memory_space<vmem>>, %arg6: memref<1x1xf32, #tpu.memory_space<vmem>>) attributes {dimension_semantics = [], scalar_prefetch = 0 : i64, scratch_operands = 0 : i64, tpu.core_type = #tpu.core_type<tc>} {
    %c0 = arith.constant 0 : index
    %c0_0 = arith.constant 0 : index
    %0 = vector.load %arg1[%c0, %c0_0] : memref<1x512xf32, #tpu.memory_space<vmem>>, vector<1x512xf32>
    %c0_1 = arith.constant 0 : index
    %c0_2 = arith.constant 0 : index
    %1 = vector.load %arg3[%c0_1, %c0_2] : memref<1x512xf32, #tpu.memory_space<vmem>>, vector<1x512xf32>
    %cst = arith.constant 0.000000e+00 : f32
    %2 = vector.broadcast %cst : f32 to vector<1x128xf32>
    %cst_3 = arith.constant 0.000000e+00 : f32
    %3 = vector.broadcast %cst_3 : f32 to vector<1x128xf32>
    %c0_i32 = arith.constant 0 : i32
    %4 = arith.index_cast %c0_i32 : i32 to index
    %5 = memref.load %arg0[%4] : memref<8xf32, #tpu.memory_space<smem>>
    %6 = vector.broadcast %5 : f32 to vector<1x512xf32>
    %7 = arith.mulf %6, %0 : vector<1x512xf32>
    %8 = arith.addf %7, %1 : vector<1x512xf32>
    %c0_4 = arith.constant 0 : index
    %c0_5 = arith.constant 0 : index
    %9 = vector.load %arg2[%c0_4, %c0_5] : memref<128x512xf32, #tpu.memory_space<vmem>>, vector<128x512xf32>
    %cst_6 = arith.constant dense<0.000000e+00> : vector<1x512xf32>
    %10 = tpu.matmul %2, %9, %cst_6 {dimension_numbers = #tpu.dot_dimension_numbers<[1], [0], [0], [1], [0, 0, 1, 1], [], []>} : vector<1x128xf32>, vector<128x512xf32>, vector<1x512xf32> -> vector<1x512xf32>
    %11 = arith.addf %8, %10 : vector<1x512xf32>
    %12 = vector.extract_strided_slice %11 {offsets = [0, 0], sizes = [1, 384], strides = [1, 1]} : vector<1x512xf32> to vector<1x384xf32>
    %13 = arith.negf %12 : vector<1x384xf32>
    %14 = math.exp %13 : vector<1x384xf32>
    %cst_7 = arith.constant 1.000000e+00 : f32
    %15 = vector.broadcast %cst_7 : f32 to vector<1x384xf32>
    %16 = arith.addf %15, %14 : vector<1x384xf32>
    %17 = arith.divf %15, %16 : vector<1x384xf32>
    %18 = vector.extract_strided_slice %17 {offsets = [0, 0], sizes = [1, 128], strides = [1, 1]} : vector<1x384xf32> to vector<1x128xf32>
    %19 = vector.extract_strided_slice %17 {offsets = [0, 128], sizes = [1, 128], strides = [1, 1]} : vector<1x384xf32> to vector<1x128xf32>
    %20 = vector.extract_strided_slice %17 {offsets = [0, 256], sizes = [1, 128], strides = [1, 1]} : vector<1x384xf32> to vector<1x128xf32>
    %21 = vector.extract_strided_slice %11 {offsets = [0, 384], sizes = [1, 128], strides = [1, 1]} : vector<1x512xf32> to vector<1x128xf32>
    %22 = math.tanh %21 : vector<1x128xf32>
    %23 = arith.mulf %19, %3 : vector<1x128xf32>
    %24 = arith.mulf %18, %22 : vector<1x128xf32>
    %25 = arith.addf %23, %24 : vector<1x128xf32>
    %26 = math.tanh %25 : vector<1x128xf32>
    %27 = arith.mulf %20, %26 : vector<1x128xf32>
    %c1_i32 = arith.constant 1 : i32
    %28 = arith.index_cast %c1_i32 : i32 to index
    %29 = memref.load %arg0[%28] : memref<8xf32, #tpu.memory_space<smem>>
    %30 = vector.broadcast %29 : f32 to vector<1x512xf32>
    %31 = arith.mulf %30, %0 : vector<1x512xf32>
    %32 = arith.addf %31, %1 : vector<1x512xf32>
    %c0_8 = arith.constant 0 : index
    %c0_9 = arith.constant 0 : index
    %33 = vector.load %arg2[%c0_8, %c0_9] : memref<128x512xf32, #tpu.memory_space<vmem>>, vector<128x512xf32>
    %cst_10 = arith.constant dense<0.000000e+00> : vector<1x512xf32>
    %34 = tpu.matmul %27, %33, %cst_10 {dimension_numbers = #tpu.dot_dimension_numbers<[1], [0], [0], [1], [0, 0, 1, 1], [], []>} : vector<1x128xf32>, vector<128x512xf32>, vector<1x512xf32> -> vector<1x512xf32>
    %35 = arith.addf %32, %34 : vector<1x512xf32>
    %36 = vector.extract_strided_slice %35 {offsets = [0, 0], sizes = [1, 384], strides = [1, 1]} : vector<1x512xf32> to vector<1x384xf32>
    %37 = arith.negf %36 : vector<1x384xf32>
    %38 = math.exp %37 : vector<1x384xf32>
    %cst_11 = arith.constant 1.000000e+00 : f32
    %39 = vector.broadcast %cst_11 : f32 to vector<1x384xf32>
    %40 = arith.addf %39, %38 : vector<1x384xf32>
    %41 = arith.divf %39, %40 : vector<1x384xf32>
    %42 = vector.extract_strided_slice %41 {offsets = [0, 0], sizes = [1, 128], strides = [1, 1]} : vector<1x384xf32> to vector<1x128xf32>
    %43 = vector.extract_strided_slice %41 {offsets = [0, 128], sizes = [1, 128], strides = [1, 1]} : vector<1x384xf32> to vector<1x128xf32>
    %44 = vector.extract_strided_slice %41 {offsets = [0, 256], sizes = [1, 128], strides = [1, 1]} : vector<1x384xf32> to vector<1x128xf32>
    %45 = vector.extract_strided_slice %35 {offsets = [0, 384], sizes = [1, 128], strides = [1, 1]} : vector<1x512xf32> to vector<1x128xf32>
    %46 = math.tanh %45 : vector<1x128xf32>
    %47 = arith.mulf %43, %25 : vector<1x128xf32>
    %48 = arith.mulf %42, %46 : vector<1x128xf32>
    %49 = arith.addf %47, %48 : vector<1x128xf32>
    %50 = math.tanh %49 : vector<1x128xf32>
    %51 = arith.mulf %44, %50 : vector<1x128xf32>
    %c2_i32 = arith.constant 2 : i32
    %52 = arith.index_cast %c2_i32 : i32 to index
    %53 = memref.load %arg0[%52] : memref<8xf32, #tpu.memory_space<smem>>
    %54 = vector.broadcast %53 : f32 to vector<1x512xf32>
    %55 = arith.mulf %54, %0 : vector<1x512xf32>
    %56 = arith.addf %55, %1 : vector<1x512xf32>
    %c0_12 = arith.constant 0 : index
    %c0_13 = arith.constant 0 : index
    %57 = vector.load %arg2[%c0_12, %c0_13] : memref<128x512xf32, #tpu.memory_space<vmem>>, vector<128x512xf32>
    %cst_14 = arith.constant dense<0.000000e+00> : vector<1x512xf32>
    %58 = tpu.matmul %51, %57, %cst_14 {dimension_numbers = #tpu.dot_dimension_numbers<[1], [0], [0], [1], [0, 0, 1, 1], [], []>} : vector<1x128xf32>, vector<128x512xf32>, vector<1x512xf32> -> vector<1x512xf32>
    %59 = arith.addf %56, %58 : vector<1x512xf32>
    %60 = vector.extract_strided_slice %59 {offsets = [0, 0], sizes = [1, 384], strides = [1, 1]} : vector<1x512xf32> to vector<1x384xf32>
    %61 = arith.negf %60 : vector<1x384xf32>
    %62 = math.exp %61 : vector<1x384xf32>
    %cst_15 = arith.constant 1.000000e+00 : f32
    %63 = vector.broadcast %cst_15 : f32 to vector<1x384xf32>
    %64 = arith.addf %63, %62 : vector<1x384xf32>
    %65 = arith.divf %63, %64 : vector<1x384xf32>
    %66 = vector.extract_strided_slice %65 {offsets = [0, 0], sizes = [1, 128], strides = [1, 1]} : vector<1x384xf32> to vector<1x128xf32>
    %67 = vector.extract_strided_slice %65 {offsets = [0, 128], sizes = [1, 128], strides = [1, 1]} : vector<1x384xf32> to vector<1x128xf32>
    %68 = vector.extract_strided_slice %65 {offsets = [0, 256], sizes = [1, 128], strides = [1, 1]} : vector<1x384xf32> to vector<1x128xf32>
    %69 = vector.extract_strided_slice %59 {offsets = [0, 384], sizes = [1, 128], strides = [1, 1]} : vector<1x512xf32> to vector<1x128xf32>
    %70 = math.tanh %69 : vector<1x128xf32>
    %71 = arith.mulf %67, %49 : vector<1x128xf32>
    %72 = arith.mulf %66, %70 : vector<1x128xf32>
    %73 = arith.addf %71, %72 : vector<1x128xf32>
    %74 = math.tanh %73 : vector<1x128xf32>
    %75 = arith.mulf %68, %74 : vector<1x128xf32>
    %c3_i32 = arith.constant 3 : i32
    %76 = arith.index_cast %c3_i32 : i32 to index
    %77 = memref.load %arg0[%76] : memref<8xf32, #tpu.memory_space<smem>>
    %78 = vector.broadcast %77 : f32 to vector<1x512xf32>
    %79 = arith.mulf %78, %0 : vector<1x512xf32>
    %80 = arith.addf %79, %1 : vector<1x512xf32>
    %c0_16 = arith.constant 0 : index
    %c0_17 = arith.constant 0 : index
    %81 = vector.load %arg2[%c0_16, %c0_17] : memref<128x512xf32, #tpu.memory_space<vmem>>, vector<128x512xf32>
    %cst_18 = arith.constant dense<0.000000e+00> : vector<1x512xf32>
    %82 = tpu.matmul %75, %81, %cst_18 {dimension_numbers = #tpu.dot_dimension_numbers<[1], [0], [0], [1], [0, 0, 1, 1], [], []>} : vector<1x128xf32>, vector<128x512xf32>, vector<1x512xf32> -> vector<1x512xf32>
    %83 = arith.addf %80, %82 : vector<1x512xf32>
    %84 = vector.extract_strided_slice %83 {offsets = [0, 0], sizes = [1, 384], strides = [1, 1]} : vector<1x512xf32> to vector<1x384xf32>
    %85 = arith.negf %84 : vector<1x384xf32>
    %86 = math.exp %85 : vector<1x384xf32>
    %cst_19 = arith.constant 1.000000e+00 : f32
    %87 = vector.broadcast %cst_19 : f32 to vector<1x384xf32>
    %88 = arith.addf %87, %86 : vector<1x384xf32>
    %89 = arith.divf %87, %88 : vector<1x384xf32>
    %90 = vector.extract_strided_slice %89 {offsets = [0, 0], sizes = [1, 128], strides = [1, 1]} : vector<1x384xf32> to vector<1x128xf32>
    %91 = vector.extract_strided_slice %89 {offsets = [0, 128], sizes = [1, 128], strides = [1, 1]} : vector<1x384xf32> to vector<1x128xf32>
    %92 = vector.extract_strided_slice %89 {offsets = [0, 256], sizes = [1, 128], strides = [1, 1]} : vector<1x384xf32> to vector<1x128xf32>
    %93 = vector.extract_strided_slice %83 {offsets = [0, 384], sizes = [1, 128], strides = [1, 1]} : vector<1x512xf32> to vector<1x128xf32>
    %94 = math.tanh %93 : vector<1x128xf32>
    %95 = arith.mulf %91, %73 : vector<1x128xf32>
    %96 = arith.mulf %90, %94 : vector<1x128xf32>
    %97 = arith.addf %95, %96 : vector<1x128xf32>
    %98 = math.tanh %97 : vector<1x128xf32>
    %99 = arith.mulf %92, %98 : vector<1x128xf32>
    %c4_i32 = arith.constant 4 : i32
    %100 = arith.index_cast %c4_i32 : i32 to index
    %101 = memref.load %arg0[%100] : memref<8xf32, #tpu.memory_space<smem>>
    %102 = vector.broadcast %101 : f32 to vector<1x512xf32>
    %103 = arith.mulf %102, %0 : vector<1x512xf32>
    %104 = arith.addf %103, %1 : vector<1x512xf32>
    %c0_20 = arith.constant 0 : index
    %c0_21 = arith.constant 0 : index
    %105 = vector.load %arg2[%c0_20, %c0_21] : memref<128x512xf32, #tpu.memory_space<vmem>>, vector<128x512xf32>
    %cst_22 = arith.constant dense<0.000000e+00> : vector<1x512xf32>
    %106 = tpu.matmul %99, %105, %cst_22 {dimension_numbers = #tpu.dot_dimension_numbers<[1], [0], [0], [1], [0, 0, 1, 1], [], []>} : vector<1x128xf32>, vector<128x512xf32>, vector<1x512xf32> -> vector<1x512xf32>
    %107 = arith.addf %104, %106 : vector<1x512xf32>
    %108 = vector.extract_strided_slice %107 {offsets = [0, 0], sizes = [1, 384], strides = [1, 1]} : vector<1x512xf32> to vector<1x384xf32>
    %109 = arith.negf %108 : vector<1x384xf32>
    %110 = math.exp %109 : vector<1x384xf32>
    %cst_23 = arith.constant 1.000000e+00 : f32
    %111 = vector.broadcast %cst_23 : f32 to vector<1x384xf32>
    %112 = arith.addf %111, %110 : vector<1x384xf32>
    %113 = arith.divf %111, %112 : vector<1x384xf32>
    %114 = vector.extract_strided_slice %113 {offsets = [0, 0], sizes = [1, 128], strides = [1, 1]} : vector<1x384xf32> to vector<1x128xf32>
    %115 = vector.extract_strided_slice %113 {offsets = [0, 128], sizes = [1, 128], strides = [1, 1]} : vector<1x384xf32> to vector<1x128xf32>
    %116 = vector.extract_strided_slice %113 {offsets = [0, 256], sizes = [1, 128], strides = [1, 1]} : vector<1x384xf32> to vector<1x128xf32>
    %117 = vector.extract_strided_slice %107 {offsets = [0, 384], sizes = [1, 128], strides = [1, 1]} : vector<1x512xf32> to vector<1x128xf32>
    %118 = math.tanh %117 : vector<1x128xf32>
    %119 = arith.mulf %115, %97 : vector<1x128xf32>
    %120 = arith.mulf %114, %118 : vector<1x128xf32>
    %121 = arith.addf %119, %120 : vector<1x128xf32>
    %122 = math.tanh %121 : vector<1x128xf32>
    %123 = arith.mulf %116, %122 : vector<1x128xf32>
    %c5_i32 = arith.constant 5 : i32
    %124 = arith.index_cast %c5_i32 : i32 to index
    %125 = memref.load %arg0[%124] : memref<8xf32, #tpu.memory_space<smem>>
    %126 = vector.broadcast %125 : f32 to vector<1x512xf32>
    %127 = arith.mulf %126, %0 : vector<1x512xf32>
    %128 = arith.addf %127, %1 : vector<1x512xf32>
    %c0_24 = arith.constant 0 : index
    %c0_25 = arith.constant 0 : index
    %129 = vector.load %arg2[%c0_24, %c0_25] : memref<128x512xf32, #tpu.memory_space<vmem>>, vector<128x512xf32>
    %cst_26 = arith.constant dense<0.000000e+00> : vector<1x512xf32>
    %130 = tpu.matmul %123, %129, %cst_26 {dimension_numbers = #tpu.dot_dimension_numbers<[1], [0], [0], [1], [0, 0, 1, 1], [], []>} : vector<1x128xf32>, vector<128x512xf32>, vector<1x512xf32> -> vector<1x512xf32>
    %131 = arith.addf %128, %130 : vector<1x512xf32>
    %132 = vector.extract_strided_slice %131 {offsets = [0, 0], sizes = [1, 384], strides = [1, 1]} : vector<1x512xf32> to vector<1x384xf32>
    %133 = arith.negf %132 : vector<1x384xf32>
    %134 = math.exp %133 : vector<1x384xf32>
    %cst_27 = arith.constant 1.000000e+00 : f32
    %135 = vector.broadcast %cst_27 : f32 to vector<1x384xf32>
    %136 = arith.addf %135, %134 : vector<1x384xf32>
    %137 = arith.divf %135, %136 : vector<1x384xf32>
    %138 = vector.extract_strided_slice %137 {offsets = [0, 0], sizes = [1, 128], strides = [1, 1]} : vector<1x384xf32> to vector<1x128xf32>
    %139 = vector.extract_strided_slice %137 {offsets = [0, 128], sizes = [1, 128], strides = [1, 1]} : vector<1x384xf32> to vector<1x128xf32>
    %140 = vector.extract_strided_slice %137 {offsets = [0, 256], sizes = [1, 128], strides = [1, 1]} : vector<1x384xf32> to vector<1x128xf32>
    %141 = vector.extract_strided_slice %131 {offsets = [0, 384], sizes = [1, 128], strides = [1, 1]} : vector<1x512xf32> to vector<1x128xf32>
    %142 = math.tanh %141 : vector<1x128xf32>
    %143 = arith.mulf %139, %121 : vector<1x128xf32>
    %144 = arith.mulf %138, %142 : vector<1x128xf32>
    %145 = arith.addf %143, %144 : vector<1x128xf32>
    %146 = math.tanh %145 : vector<1x128xf32>
    %147 = arith.mulf %140, %146 : vector<1x128xf32>
    %c6_i32 = arith.constant 6 : i32
    %148 = arith.index_cast %c6_i32 : i32 to index
    %149 = memref.load %arg0[%148] : memref<8xf32, #tpu.memory_space<smem>>
    %150 = vector.broadcast %149 : f32 to vector<1x512xf32>
    %151 = arith.mulf %150, %0 : vector<1x512xf32>
    %152 = arith.addf %151, %1 : vector<1x512xf32>
    %c0_28 = arith.constant 0 : index
    %c0_29 = arith.constant 0 : index
    %153 = vector.load %arg2[%c0_28, %c0_29] : memref<128x512xf32, #tpu.memory_space<vmem>>, vector<128x512xf32>
    %cst_30 = arith.constant dense<0.000000e+00> : vector<1x512xf32>
    %154 = tpu.matmul %147, %153, %cst_30 {dimension_numbers = #tpu.dot_dimension_numbers<[1], [0], [0], [1], [0, 0, 1, 1], [], []>} : vector<1x128xf32>, vector<128x512xf32>, vector<1x512xf32> -> vector<1x512xf32>
    %155 = arith.addf %152, %154 : vector<1x512xf32>
    %156 = vector.extract_strided_slice %155 {offsets = [0, 0], sizes = [1, 384], strides = [1, 1]} : vector<1x512xf32> to vector<1x384xf32>
    %157 = arith.negf %156 : vector<1x384xf32>
    %158 = math.exp %157 : vector<1x384xf32>
    %cst_31 = arith.constant 1.000000e+00 : f32
    %159 = vector.broadcast %cst_31 : f32 to vector<1x384xf32>
    %160 = arith.addf %159, %158 : vector<1x384xf32>
    %161 = arith.divf %159, %160 : vector<1x384xf32>
    %162 = vector.extract_strided_slice %161 {offsets = [0, 0], sizes = [1, 128], strides = [1, 1]} : vector<1x384xf32> to vector<1x128xf32>
    %163 = vector.extract_strided_slice %161 {offsets = [0, 128], sizes = [1, 128], strides = [1, 1]} : vector<1x384xf32> to vector<1x128xf32>
    %164 = vector.extract_strided_slice %161 {offsets = [0, 256], sizes = [1, 128], strides = [1, 1]} : vector<1x384xf32> to vector<1x128xf32>
    %165 = vector.extract_strided_slice %155 {offsets = [0, 384], sizes = [1, 128], strides = [1, 1]} : vector<1x512xf32> to vector<1x128xf32>
    %166 = math.tanh %165 : vector<1x128xf32>
    %167 = arith.mulf %163, %145 : vector<1x128xf32>
    %168 = arith.mulf %162, %166 : vector<1x128xf32>
    %169 = arith.addf %167, %168 : vector<1x128xf32>
    %170 = math.tanh %169 : vector<1x128xf32>
    %171 = arith.mulf %164, %170 : vector<1x128xf32>
    %c7_i32 = arith.constant 7 : i32
    %172 = arith.index_cast %c7_i32 : i32 to index
    %173 = memref.load %arg0[%172] : memref<8xf32, #tpu.memory_space<smem>>
    %174 = vector.broadcast %173 : f32 to vector<1x512xf32>
    %175 = arith.mulf %174, %0 : vector<1x512xf32>
    %176 = arith.addf %175, %1 : vector<1x512xf32>
    %c0_32 = arith.constant 0 : index
    %c0_33 = arith.constant 0 : index
    %177 = vector.load %arg2[%c0_32, %c0_33] : memref<128x512xf32, #tpu.memory_space<vmem>>, vector<128x512xf32>
    %cst_34 = arith.constant dense<0.000000e+00> : vector<1x512xf32>
    %178 = tpu.matmul %171, %177, %cst_34 {dimension_numbers = #tpu.dot_dimension_numbers<[1], [0], [0], [1], [0, 0, 1, 1], [], []>} : vector<1x128xf32>, vector<128x512xf32>, vector<1x512xf32> -> vector<1x512xf32>
    %179 = arith.addf %176, %178 : vector<1x512xf32>
    %180 = vector.extract_strided_slice %179 {offsets = [0, 0], sizes = [1, 384], strides = [1, 1]} : vector<1x512xf32> to vector<1x384xf32>
    %181 = arith.negf %180 : vector<1x384xf32>
    %182 = math.exp %181 : vector<1x384xf32>
    %cst_35 = arith.constant 1.000000e+00 : f32
    %183 = vector.broadcast %cst_35 : f32 to vector<1x384xf32>
    %184 = arith.addf %183, %182 : vector<1x384xf32>
    %185 = arith.divf %183, %184 : vector<1x384xf32>
    %186 = vector.extract_strided_slice %185 {offsets = [0, 0], sizes = [1, 128], strides = [1, 1]} : vector<1x384xf32> to vector<1x128xf32>
    %187 = vector.extract_strided_slice %185 {offsets = [0, 128], sizes = [1, 128], strides = [1, 1]} : vector<1x384xf32> to vector<1x128xf32>
    %188 = vector.extract_strided_slice %185 {offsets = [0, 256], sizes = [1, 128], strides = [1, 1]} : vector<1x384xf32> to vector<1x128xf32>
    %189 = vector.extract_strided_slice %179 {offsets = [0, 384], sizes = [1, 128], strides = [1, 1]} : vector<1x512xf32> to vector<1x128xf32>
    %190 = math.tanh %189 : vector<1x128xf32>
    %191 = arith.mulf %187, %169 : vector<1x128xf32>
    %192 = arith.mulf %186, %190 : vector<1x128xf32>
    %193 = arith.addf %191, %192 : vector<1x128xf32>
    %194 = math.tanh %193 : vector<1x128xf32>
    %195 = arith.mulf %188, %194 : vector<1x128xf32>
    %c8_i32 = arith.constant 8 : i32
    %c0_36 = arith.constant 0 : index
    %c0_37 = arith.constant 0 : index
    %196 = vector.load %arg4[%c0_36, %c0_37] : memref<1x128xf32, #tpu.memory_space<vmem>>, vector<1x128xf32>
    %197 = arith.mulf %195, %196 : vector<1x128xf32>
    %cst_38 = arith.constant dense<0.000000e+00> : vector<1xf32>
    %198 = vector.multi_reduction <add>, %197, %cst_38 [1] : vector<1x128xf32> to vector<1xf32>
    %199 = vector.shape_cast %198 : vector<1xf32> to vector<1x1xf32>
    %c0_39 = arith.constant 0 : index
    %c0_40 = arith.constant 0 : index
    %200 = vector.load %arg5[%c0_39, %c0_40] : memref<1x1xf32, #tpu.memory_space<vmem>>, vector<1x1xf32>
    %201 = arith.addf %199, %200 : vector<1x1xf32>
    %c0_41 = arith.constant 0 : index
    %c0_42 = arith.constant 0 : index
    %202 = vector.load %arg6[%c0_41, %c0_42] : memref<1x1xf32, #tpu.memory_space<vmem>>, vector<1x1xf32>
    tpu.vector_store %arg6[%c0_41, %c0_42], %201 {strides = array<i32>} : memref<1x1xf32, #tpu.memory_space<vmem>>, vector<1x1xf32>,
    return
  }
}

</mosaic_0001>

<llo_original>
// kernel: tpu_custom_call.1
$region0: #{tpu_custom_call.1}
  #allocation0 [shape = 'u32[]', space=smem, size = 0x4, offset = 0x4, fixed_abs, tag = 'smem constant byte address 0x4 - core index']
  #allocation1 [shape = 'u32[72,128]{1,0:T(1,128)}', space=vmem, size = 0x9000, scoped, tag = 'internal scratch']
  #allocation2 [shape = 'f32[1,1]{1,0:T(1,128)S(1)}', space=vmem, size = 0x200, scoped, tag = 'scoped memory for tpu_custom_call.1']
  %s0 = inlined_call_operand.hbm [shape: f32[8], index: 0, kind: input, shape index: {}]
  %s1 = inlined_call_operand.hbm [shape: f32[1,512], index: 1, kind: input, shape index: {}]
  %s2 = inlined_call_operand.hbm [shape: f32[128,512], index: 2, kind: input, shape index: {}]
  %s3 = inlined_call_operand.vmem [shape: f32[1,512], index: 3, kind: input, shape index: {}]
  %s4 = inlined_call_operand.vmem [shape: f32[1,128], index: 4, kind: input, shape index: {}]
  %s5 = inlined_call_operand.<no memory space> [shape: f32[1,1], index: 5, kind: input, shape index: {}]
  %s6 = inlined_call_operand.hbm [shape: f32[1,1], index: 6, kind: output, shape index: {}]
  %s7 = sld [smem:[#allocation0]]
  $region46: #{tpu_custom_call.1} parent=0
    _
  %s9 = ssub.s32 1, %s7
  %s10 = scalar_select 0, %s9, %s7
  %v11 = vstv %s5
  %12 = vst [vmem:[#allocation2] sm:$0x1] %v11
  $region1: #{tpu_custom_call.1} parent=0
    #allocation3 [shape = 'u8[512]{0}', space=smem, size = 0x200, scoped, tag = 'input window, operand 0, single buffered']
    #allocation4 [shape = 's32[1]{0}', space=sflag, size = 0x4, scoped, tag = 'scoped memory for tpu_custom_call.1']
    #allocation5 [shape = 's32[1]{0}', space=sflag, size = 0x4, scoped, tag = 'scoped memory for tpu_custom_call.1']
    #allocation6 [shape = 's32[1]{0}', space=sflag, size = 0x4, scoped, tag = 'scoped memory for tpu_custom_call.1']
    #allocation7 [shape = 'u8[2048]{0}', space=vmem, size = 0x800, scoped, tag = 'input window, operand 1, single buffered']
    #allocation8 [shape = 'u8[262144]{0}', space=vmem, size = 0x40000, scoped, tag = 'input window, operand 2, single buffered']
    #allocation9 [shape = 's32[1]{0}', space=sflag, size = 0x4, scoped, tag = 'scoped memory for tpu_custom_call.1']
    #allocation10 [shape = 'u8[512]{0}', space=vmem, size = 0x400, scoped, tag = 'output window, operand 0, single buffered']
    %13 = vsyncpa [#allocation6], 0
    %14 = vsyncpa [#allocation4], 0
    %15 = vsyncpa [#allocation9], 0
    %16 = vsyncpa [#allocation5], 0
    // Predicated region
    $region2: #{tpu_custom_call.1} parent=1 // pred_check
      _
    $region3: #{tpu_custom_call.1} parent=1 // pred_check_branch
      %18 = sbr.rel (0) target = $region5
    $region4: #{tpu_custom_call.1} parent=1 // pred_region
      %20 = vsyncadd [#allocation6], 0
      %s22 = sshll.u32 %s0, 4
      %s23 = int_to_ptr.hbm [resolvable:$true] %s22
      %25 = dma.hbm_to_smem %s23, 16, [#allocation3], [#allocation6]
    $region5: #{tpu_custom_call.1} parent=1 // pred_fallthru
      _
    // Predicated region
    $region6: #{tpu_custom_call.1} parent=1 // pred_check
      _
    $region7: #{tpu_custom_call.1} parent=1 // pred_check_branch
      %27 = sbr.rel (0) target = $region9
    $region8: #{tpu_custom_call.1} parent=1 // pred_region
      %29 = vsyncadd [#allocation4], 0
      %s31 = sshll.u32 %s1, 4
      %s32 = int_to_ptr.hbm [resolvable:$true] %s31
      %s33 = sshll.u32 [#allocation7], 4
      %s34 = int_to_ptr.vmem [resolvable:$true] %s33
      %36 = dma.hbm_to_vmem [thread:$0]  %s32, 64, %s34, [#allocation4]
    $region9: #{tpu_custom_call.1} parent=1 // pred_fallthru
      _
    // Predicated region
    $region10: #{tpu_custom_call.1} parent=1 // pred_check
      _
    $region11: #{tpu_custom_call.1} parent=1 // pred_check_branch
      %38 = sbr.rel (0) target = $region13
    $region12: #{tpu_custom_call.1} parent=1 // pred_region
      %40 = vsyncadd [#allocation9], 0
      %s41 = sshll.u32 %s2, 4
      %s42 = int_to_ptr.hbm [resolvable:$true] %s41
      %s43 = sshll.u32 [#allocation8], 4
      %s44 = int_to_ptr.vmem [resolvable:$true] %s43
      %49 = dma.hbm_to_vmem [thread:$0]  %s42, 8192, %s44, [#allocation9], 512, 512, 32
    $region13: #{tpu_custom_call.1} parent=1 // pred_fallthru
      _
    // Predicated region
    $region14: #{tpu_custom_call.1} parent=1 // pred_check
      _
    $region15: #{tpu_custom_call.1} parent=1 // pred_check_branch
      %51 = sbr.rel (0) target = $region17
    $region16: #{tpu_custom_call.1} parent=1 // pred_region
      _
    $region17: #{tpu_custom_call.1} parent=1 // pred_fallthru
      _
    // Predicated region
    $region18: #{tpu_custom_call.1} parent=1 // pred_check
      _
    $region19: #{tpu_custom_call.1} parent=1 // pred_check_branch
      %53 = sbr.rel (0) target = $region21
    $region20: #{tpu_custom_call.1} parent=1 // pred_region
      _
    $region21: #{tpu_custom_call.1} parent=1 // pred_fallthru
      _
    // Predicated region
    $region22: #{tpu_custom_call.1} parent=1 // pred_check
      _
    $region23: #{tpu_custom_call.1} parent=1 // pred_check_branch
      %55 = sbr.rel (0) target = $region25
    $region24: #{tpu_custom_call.1} parent=1 // pred_region
      _
    $region25: #{tpu_custom_call.1} parent=1 // pred_fallthru
      _
    // Predicated region
    $region26: #{tpu_custom_call.1} parent=1 // pred_check
      _
    $region27: #{tpu_custom_call.1} parent=1 // pred_check_branch
      %57 = sbr.rel (0) target = $region29
    $region28: #{tpu_custom_call.1} parent=1 // pred_region
      %59 = dma.done [#allocation6], 16
    $region29: #{tpu_custom_call.1} parent=1 // pred_fallthru
      _
    // Predicated region
    $region30: #{tpu_custom_call.1} parent=1 // pred_check
      _
    $region31: #{tpu_custom_call.1} parent=1 // pred_check_branch
      %61 = sbr.rel (0) target = $region33
    $region32: #{tpu_custom_call.1} parent=1 // pred_region
      %63 = dma.done [#allocation4], 64
    $region33: #{tpu_custom_call.1} parent=1 // pred_fallthru
      _
    // Predicated region
    $region34: #{tpu_custom_call.1} parent=1 // pred_check
      _
    $region35: #{tpu_custom_call.1} parent=1 // pred_check_branch
      %65 = sbr.rel (0) target = $region37
    $region36: #{tpu_custom_call.1} parent=1 // pred_region
      %67 = dma.done [#allocation9], 8192
    $region37: #{tpu_custom_call.1} parent=1 // pred_fallthru
      _
    %68 = sfence
    %v69 = vld [vmem:[#allocation7] sm:$0xf]
    %v70 = vld [vmem:[%s3] sm:$0xf]
    %s71 = sld [smem:[#allocation3]]
    %v72 = vstv %s71
    %v73 = vmul.f32 %v72, %v69
    %v74 = vadd.f32 %v73, %v70
    %v75 = vld [vmem:[#allocation8] sm:$0xff]
    %v76 = vld [vmem:[#allocation8 + $0x8] sm:$0xff]
    %v77 = vld [vmem:[#allocation8 + $0x10] sm:$0xff]
    %v78 = vld [vmem:[#allocation8 + $0x18] sm:$0xff]
    %v79 = vld [vmem:[#allocation8 + $0x20] sm:$0xff]
    %v80 = vld [vmem:[#allocation8 + $0x28] sm:$0xff]
    %v81 = vld [vmem:[#allocation8 + $0x30] sm:$0xff]
    %v82 = vld [vmem:[#allocation8 + $0x38] sm:$0xff]
    %v83 = vld [vmem:[#allocation8 + $0x40] sm:$0xff]
    %v84 = vld [vmem:[#allocation8 + $0x48] sm:$0xff]
    %v85 = vld [vmem:[#allocation8 + $0x50] sm:$0xff]
    %v86 = vld [vmem:[#allocation8 + $0x58] sm:$0xff]
    %v87 = vld [vmem:[#allocation8 + $0x60] sm:$0xff]
    %v88 = vld [vmem:[#allocation8 + $0x68] sm:$0xff]
    %v89 = vld [vmem:[#allocation8 + $0x70] sm:$0xff]
    %v90 = vld [vmem:[#allocation8 + $0x78] sm:$0xff]
    %v91 = vld [vmem:[#allocation8 + $0x80] sm:$0xff]
    %v92 = vld [vmem:[#allocation8 + $0x88] sm:$0xff]
    %v93 = vld [vmem:[#allocation8 + $0x90] sm:$0xff]
    %v94 = vld [vmem:[#allocation8 + $0x98] sm:$0xff]
    %v95 = vld [vmem:[#allocation8 + $0xa0] sm:$0xff]
    %v96 = vld [vmem:[#allocation8 + $0xa8] sm:$0xff]
    %v97 = vld [vmem:[#allocation8 + $0xb0] sm:$0xff]
    %v98 = vld [vmem:[#allocation8 + $0xb8] sm:$0xff]
    %v99 = vld [vmem:[#allocation8 + $0xc0] sm:$0xff]
    %v100 = vld [vmem:[#allocation8 + $0xc8] sm:$0xff]
    %v101 = vld [vmem:[#allocation8 + $0xd0] sm:$0xff]
    %v102 = vld [vmem:[#allocation8 + $0xd8] sm:$0xff]
    %v103 = vld [vmem:[#allocation8 + $0xe0] sm:$0xff]
    %v104 = vld [vmem:[#allocation8 + $0xe8] sm:$0xff]
    %v105 = vld [vmem:[#allocation8 + $0xf0] sm:$0xff]
    %v106 = vld [vmem:[#allocation8 + $0xf8] sm:$0xff]
    %v107 = vld [vmem:[#allocation8 + $0x100] sm:$0xff]
    %v108 = vld [vmem:[#allocation8 + $0x108] sm:$0xff]
    %v109 = vld [vmem:[#allocation8 + $0x110] sm:$0xff]
    %v110 = vld [vmem:[#allocation8 + $0x118] sm:$0xff]
    %v111 = vld [vmem:[#allocation8 + $0x120] sm:$0xff]
    %v112 = vld [vmem:[#allocation8 + $0x128] sm:$0xff]
    %v113 = vld [vmem:[#allocation8 + $0x130] sm:$0xff]
    %v114 = vld [vmem:[#allocation8 + $0x138] sm:$0xff]
    %v115 = vld [vmem:[#allocation8 + $0x140] sm:$0xff]
    %v116 = vld [vmem:[#allocation8 + $0x148] sm:$0xff]
    %v117 = vld [vmem:[#allocation8 + $0x150] sm:$0xff]
    %v118 = vld [vmem:[#allocation8 + $0x158] sm:$0xff]
    %v119 = vld [vmem:[#allocation8 + $0x160] sm:$0xff]
    %v120 = vld [vmem:[#allocation8 + $0x168] sm:$0xff]
    %v121 = vld [vmem:[#allocation8 + $0x170] sm:$0xff]
    %v122 = vld [vmem:[#allocation8 + $0x178] sm:$0xff]
    %v123 = vld [vmem:[#allocation8 + $0x180] sm:$0xff]
    %v124 = vld [vmem:[#allocation8 + $0x188] sm:$0xff]
    %v125 = vld [vmem:[#allocation8 + $0x190] sm:$0xff]
    %v126 = vld [vmem:[#allocation8 + $0x198] sm:$0xff]
    %v127 = vld [vmem:[#allocation8 + $0x1a0] sm:$0xff]
    %v128 = vld [vmem:[#allocation8 + $0x1a8] sm:$0xff]
    %v129 = vld [vmem:[#allocation8 + $0x1b0] sm:$0xff]
    %v130 = vld [vmem:[#allocation8 + $0x1b8] sm:$0xff]
    %v131 = vld [vmem:[#allocation8 + $0x1c0] sm:$0xff]
    %v132 = vld [vmem:[#allocation8 + $0x1c8] sm:$0xff]
    %v133 = vld [vmem:[#allocation8 + $0x1d0] sm:$0xff]
    %v134 = vld [vmem:[#allocation8 + $0x1d8] sm:$0xff]
    %v135 = vld [vmem:[#allocation8 + $0x1e0] sm:$0xff]
    %v136 = vld [vmem:[#allocation8 + $0x1e8] sm:$0xff]
    %v137 = vld [vmem:[#allocation8 + $0x1f0] sm:$0xff]
    %v138 = vld [vmem:[#allocation8 + $0x1f8] sm:$0xff]
    %139 = vmatpush.msra.mxu0 %v135
    %140 = vmatpush.msra.mxu0 %v131
    %141 = vmatpush.msra.mxu0 %v127
    %142 = vmatpush.msra.mxu0 %v123
    %143 = vmatpush.msra.mxu0 %v119
    %144 = vmatpush.msra.mxu0 %v115
    %145 = vmatpush.msra.mxu0 %v111
    %146 = vmatpush.msra.mxu0 %v107
    %147 = vmatpush.msra.mxu0 %v103
    %148 = vmatpush.msra.mxu0 %v99
    %149 = vmatpush.msra.mxu0 %v95
    %150 = vmatpush.msra.mxu0 %v91
    %151 = vmatpush.msra.mxu0 %v87
    %152 = vmatpush.msra.mxu0 %v83
    %153 = vmatpush.msra.mxu0 %v79
    %154 = vmatpush.msra.mxu0 %v75
    %155 = vmatmul.f32.gmra.mxu0 0.0
    %v156 = vpop.f32.mrf.mxu0
    %v157 = vadd.f32 0.0, %v156
    %158 = vdwg.mxu0
    %159 = vmatpush.msra.mxu0 %v136
    %160 = vmatpush.msra.mxu0 %v132
    %161 = vmatpush.msra.mxu0 %v128
    %162 = vmatpush.msra.mxu0 %v124
    %163 = vmatpush.msra.mxu0 %v120
    %164 = vmatpush.msra.mxu0 %v116
    %165 = vmatpush.msra.mxu0 %v112
    %166 = vmatpush.msra.mxu0 %v108
    %167 = vmatpush.msra.mxu0 %v104
    %168 = vmatpush.msra.mxu0 %v100
    %169 = vmatpush.msra.mxu0 %v96
    %170 = vmatpush.msra.mxu0 %v92
    %171 = vmatpush.msra.mxu0 %v88
    %172 = vmatpush.msra.mxu0 %v84
    %173 = vmatpush.msra.mxu0 %v80
    %174 = vmatpush.msra.mxu0 %v76
    %175 = vmatmul.f32.gmra.mxu0 0.0
    %v176 = vpop.f32.mrf.mxu0
    %v177 = vadd.f32 0.0, %v176
    %178 = vdwg.mxu0
    %179 = vmatpush.msra.mxu0 %v137
    %180 = vmatpush.msra.mxu0 %v133
    %181 = vmatpush.msra.mxu0 %v129
    %182 = vmatpush.msra.mxu0 %v125
    %183 = vmatpush.msra.mxu0 %v121
    %184 = vmatpush.msra.mxu0 %v117
    %185 = vmatpush.msra.mxu0 %v113
    %186 = vmatpush.msra.mxu0 %v109
    %187 = vmatpush.msra.mxu0 %v105
    %188 = vmatpush.msra.mxu0 %v101
    %189 = vmatpush.msra.mxu0 %v97
    %190 = vmatpush.msra.mxu0 %v93
    %191 = vmatpush.msra.mxu0 %v89
    %192 = vmatpush.msra.mxu0 %v85
    %193 = vmatpush.msra.mxu0 %v81
    %194 = vmatpush.msra.mxu0 %v77
    %195 = vmatmul.f32.gmra.mxu0 0.0
    %v196 = vpop.f32.mrf.mxu0
    %v197 = vadd.f32 0.0, %v196
    %198 = vdwg.mxu0
    %199 = vmatpush.msra.mxu0 %v138
    %200 = vmatpush.msra.mxu0 %v134
    %201 = vmatpush.msra.mxu0 %v130
    %202 = vmatpush.msra.mxu0 %v126
    %203 = vmatpush.msra.mxu0 %v122
    %204 = vmatpush.msra.mxu0 %v118
    %205 = vmatpush.msra.mxu0 %v114
    %206 = vmatpush.msra.mxu0 %v110
    %207 = vmatpush.msra.mxu0 %v106
    %208 = vmatpush.msra.mxu0 %v102
    %209 = vmatpush.msra.mxu0 %v98
    %210 = vmatpush.msra.mxu0 %v94
    %211 = vmatpush.msra.mxu0 %v90
    %212 = vmatpush.msra.mxu0 %v86
    %213 = vmatpush.msra.mxu0 %v82
    %214 = vmatpush.msra.mxu0 %v78
    %215 = vmatmul.f32.gmra.mxu0 0.0
    %v216 = vpop.f32.mrf.mxu0
    %v217 = vadd.f32 0.0, %v216
    %218 = vdwg.mxu0
    %v223 = vrot.slane %v177, 7
    %v224 = vrot.slane %v197, 6
    %v225 = vrot.slane %v217, 5
    %vm226 = vcmask 1040384
    %v227 = vsel %vm226, %v157, %v223
    %vm228 = vcmask 1042434
    %v229 = vsel %vm228, %v224, %v225
    %vm230 = vcmask 1041408
    %v231 = vsel %vm230, %v227, %v229
    %v233 = vadd.f32 %v74, %v231
    %v234 = vxor.u32 %v233, 2147483648
    %v235 = vmul.f32 %v234, 1.442695
    %v236 = vpow.pop %v235
    %v237 = vadd.f32 %v236, 1.0
    %v238 = vrcp.pop %v237
    %v239 = vmul.f32 %v237, %v238
    %v240 = vsub.f32 1.0, %v239
    %v241 = vmul.f32 %v238, %v240
    %v242 = vadd.f32 %v238, %v241
    %vm243 = vweird.f32 %v237
    %vm244 = vweird.f32 %v238
    %vm245 = vmor %vm243, %vm244
    %v246 = vsel %vm245, %v238, %v242
    %v247 = vand.u32 2147483647, %v237
    %vm248 = vcmp.eq.f32.partialorder %v247, 8.507059e+37
    %v249 = vand.u32 %v237, 2147483648
    %v250 = vor.u32 1.1754944e-38, %v249
    %v251 = vsel %vm248, %v250, %v246
    %v252 = vmul.f32 1.0, %v251
    %v254 = vrot.slane %v233, 3
    %v256 = vtanh.pop %v254
    %v258 = vrot.slane %v252, 1
    %v260 = vmul.f32 %v258, 0.0
    %v261 = vmul.f32 %v252, %v256
    %v262 = vadd.f32 %v260, %v261
    %v263 = vtanh.pop %v262
    %v264 = vrot.slane %v252, 2
    %v266 = vmul.f32 %v264, %v263
    %s267 = sld [smem:[#allocation3 + $0x1]]
    %v268 = vstv %s267
    %v269 = vmul.f32 %v268, %v69
    %v270 = vadd.f32 %v269, %v70
    %271 = vmatpush.msra.mxu0 %v135
    %272 = vmatpush.msra.mxu0 %v131
    %273 = vmatpush.msra.mxu0 %v127
    %274 = vmatpush.msra.mxu0 %v123
    %275 = vmatpush.msra.mxu0 %v119
    %276 = vmatpush.msra.mxu0 %v115
    %277 = vmatpush.msra.mxu0 %v111
    %278 = vmatpush.msra.mxu0 %v107
    %279 = vmatpush.msra.mxu0 %v103
    %280 = vmatpush.msra.mxu0 %v99
    %281 = vmatpush.msra.mxu0 %v95
    %282 = vmatpush.msra.mxu0 %v91
    %283 = vmatpush.msra.mxu0 %v87
    %284 = vmatpush.msra.mxu0 %v83
    %285 = vmatpush.msra.mxu0 %v79
    %286 = vmatpush.msra.mxu0 %v75
    %287 = vmatmul.f32.gmra.mxu0 %v266
    %v288 = vpop.f32.mrf.mxu0
    %v289 = vadd.f32 0.0, %v288
    %290 = vdwg.mxu0
    %291 = vmatpush.msra.mxu0 %v136
    %292 = vmatpush.msra.mxu0 %v132
    %293 = vmatpush.msra.mxu0 %v128
    %294 = vmatpush.msra.mxu0 %v124
    %295 = vmatpush.msra.mxu0 %v120
    %296 = vmatpush.msra.mxu0 %v116
    %297 = vmatpush.msra.mxu0 %v112
    %298 = vmatpush.msra.mxu0 %v108
    %299 = vmatpush.msra.mxu0 %v104
    %300 = vmatpush.msra.mxu0 %v100
    %301 = vmatpush.msra.mxu0 %v96
    %302 = vmatpush.msra.mxu0 %v92
    %303 = vmatpush.msra.mxu0 %v88
    %304 = vmatpush.msra.mxu0 %v84
    %305 = vmatpush.msra.mxu0 %v80
    %306 = vmatpush.msra.mxu0 %v76
    %307 = vmatmul.f32.gmra.mxu0 %v266
    %v308 = vpop.f32.mrf.mxu0
    %v309 = vadd.f32 0.0, %v308
    %310 = vdwg.mxu0
    %311 = vmatpush.msra.mxu0 %v137
    %312 = vmatpush.msra.mxu0 %v133
    %313 = vmatpush.msra.mxu0 %v129
    %314 = vmatpush.msra.mxu0 %v125
    %315 = vmatpush.msra.mxu0 %v121
    %316 = vmatpush.msra.mxu0 %v117
    %317 = vmatpush.msra.mxu0 %v113
    %318 = vmatpush.msra.mxu0 %v109
    %319 = vmatpush.msra.mxu0 %v105
    %320 = vmatpush.msra.mxu0 %v101
    %321 = vmatpush.msra.mxu0 %v97
    %322 = vmatpush.msra.mxu0 %v93
    %323 = vmatpush.msra.mxu0 %v89
    %324 = vmatpush.msra.mxu0 %v85
    %325 = vmatpush.msra.mxu0 %v81
    %326 = vmatpush.msra.mxu0 %v77
    %327 = vmatmul.f32.gmra.mxu0 %v266
    %v328 = vpop.f32.mrf.mxu0
    %v329 = vadd.f32 0.0, %v328
    %330 = vdwg.mxu0
    %331 = vmatpush.msra.mxu0 %v138
    %332 = vmatpush.msra.mxu0 %v134
    %333 = vmatpush.msra.mxu0 %v130
    %334 = vmatpush.msra.mxu0 %v126
    %335 = vmatpush.msra.mxu0 %v122
    %336 = vmatpush.msra.mxu0 %v118
    %337 = vmatpush.msra.mxu0 %v114
    %338 = vmatpush.msra.mxu0 %v110
    %339 = vmatpush.msra.mxu0 %v106
    %340 = vmatpush.msra.mxu0 %v102
    %341 = vmatpush.msra.mxu0 %v98
    %342 = vmatpush.msra.mxu0 %v94
    %343 = vmatpush.msra.mxu0 %v90
    %344 = vmatpush.msra.mxu0 %v86
    %345 = vmatpush.msra.mxu0 %v82
    %346 = vmatpush.msra.mxu0 %v78
    %347 = vmatmul.f32.gmra.mxu0 %v266
    %v348 = vpop.f32.mrf.mxu0
    %v349 = vadd.f32 0.0, %v348
    %350 = vdwg.mxu0
    %v355 = vrot.slane %v309, 7
    %v356 = vrot.slane %v329, 6
    %v357 = vrot.slane %v349, 5
    %v358 = vsel %vm226, %v289, %v355
    %v359 = vsel %vm228, %v356, %v357
    %v360 = vsel %vm230, %v358, %v359
    %v362 = vadd.f32 %v270, %v360
    %v363 = vxor.u32 %v362, 2147483648
    %v364 = vmul.f32 %v363, 1.442695
    %v365 = vpow.pop %v364
    %v366 = vadd.f32 %v365, 1.0
    %v367 = vrcp.pop %v366
    %v368 = vmul.f32 %v366, %v367
    %v369 = vsub.f32 1.0, %v368
    %v370 = vmul.f32 %v367, %v369
    %v371 = vadd.f32 %v367, %v370
    %vm372 = vweird.f32 %v366
    %vm373 = vweird.f32 %v367
    %vm374 = vmor %vm372, %vm373
    %v375 = vsel %vm374, %v367, %v371
    %v376 = vand.u32 2147483647, %v366
    %vm377 = vcmp.eq.f32.partialorder %v376, 8.507059e+37
    %v378 = vand.u32 %v366, 2147483648
    %v379 = vor.u32 1.1754944e-38, %v378
    %v380 = vsel %vm377, %v379, %v375
    %v381 = vmul.f32 1.0, %v380
    %v383 = vrot.slane %v362, 3
    %v385 = vtanh.pop %v383
    %v387 = vrot.slane %v381, 1
    %v389 = vmul.f32 %v387, %v262
    %v390 = vmul.f32 %v381, %v385
    %v391 = vadd.f32 %v389, %v390
    %v392 = vtanh.pop %v391
    %v393 = vrot.slane %v381, 2
    %v395 = vmul.f32 %v393, %v392
    %s396 = sld [smem:[#allocation3 + $0x2]]
    %v397 = vstv %s396
    %v398 = vmul.f32 %v397, %v69
    %v399 = vadd.f32 %v398, %v70
    %400 = vmatpush.msra.mxu0 %v135
    %401 = vmatpush.msra.mxu0 %v131
    %402 = vmatpush.msra.mxu0 %v127
    %403 = vmatpush.msra.mxu0 %v123
    %404 = vmatpush.msra.mxu0 %v119
    %405 = vmatpush.msra.mxu0 %v115
    %406 = vmatpush.msra.mxu0 %v111
    %407 = vmatpush.msra.mxu0 %v107
    %408 = vmatpush.msra.mxu0 %v103
    %409 = vmatpush.msra.mxu0 %v99
    %410 = vmatpush.msra.mxu0 %v95
    %411 = vmatpush.msra.mxu0 %v91
    %412 = vmatpush.msra.mxu0 %v87
    %413 = vmatpush.msra.mxu0 %v83
    %414 = vmatpush.msra.mxu0 %v79
    %415 = vmatpush.msra.mxu0 %v75
    %416 = vmatmul.f32.gmra.mxu0 %v395
    %v417 = vpop.f32.mrf.mxu0
    %v418 = vadd.f32 0.0, %v417
    %419 = vdwg.mxu0
    %420 = vmatpush.msra.mxu0 %v136
    %421 = vmatpush.msra.mxu0 %v132
    %422 = vmatpush.msra.mxu0 %v128
    %423 = vmatpush.msra.mxu0 %v124
    %424 = vmatpush.msra.mxu0 %v120
    %425 = vmatpush.msra.mxu0 %v116
    %426 = vmatpush.msra.mxu0 %v112
    %427 = vmatpush.msra.mxu0 %v108
    %428 = vmatpush.msra.mxu0 %v104
    %429 = vmatpush.msra.mxu0 %v100
    %430 = vmatpush.msra.mxu0 %v96
    %431 = vmatpush.msra.mxu0 %v92
    %432 = vmatpush.msra.mxu0 %v88
    %433 = vmatpush.msra.mxu0 %v84
    %434 = vmatpush.msra.mxu0 %v80
    %435 = vmatpush.msra.mxu0 %v76
    %436 = vmatmul.f32.gmra.mxu0 %v395
    %v437 = vpop.f32.mrf.mxu0
    %v438 = vadd.f32 0.0, %v437
    %439 = vdwg.mxu0
    %440 = vmatpush.msra.mxu0 %v137
    %441 = vmatpush.msra.mxu0 %v133
    %442 = vmatpush.msra.mxu0 %v129
    %443 = vmatpush.msra.mxu0 %v125
    %444 = vmatpush.msra.mxu0 %v121
    %445 = vmatpush.msra.mxu0 %v117
    %446 = vmatpush.msra.mxu0 %v113
    %447 = vmatpush.msra.mxu0 %v109
    %448 = vmatpush.msra.mxu0 %v105
    %449 = vmatpush.msra.mxu0 %v101
    %450 = vmatpush.msra.mxu0 %v97
    %451 = vmatpush.msra.mxu0 %v93
    %452 = vmatpush.msra.mxu0 %v89
    %453 = vmatpush.msra.mxu0 %v85
    %454 = vmatpush.msra.mxu0 %v81
    %455 = vmatpush.msra.mxu0 %v77
    %456 = vmatmul.f32.gmra.mxu0 %v395
    %v457 = vpop.f32.mrf.mxu0
    %v458 = vadd.f32 0.0, %v457
    %459 = vdwg.mxu0
    %460 = vmatpush.msra.mxu0 %v138
    %461 = vmatpush.msra.mxu0 %v134
    %462 = vmatpush.msra.mxu0 %v130
    %463 = vmatpush.msra.mxu0 %v126
    %464 = vmatpush.msra.mxu0 %v122
    %465 = vmatpush.msra.mxu0 %v118
    %466 = vmatpush.msra.mxu0 %v114
    %467 = vmatpush.msra.mxu0 %v110
    %468 = vmatpush.msra.mxu0 %v106
    %469 = vmatpush.msra.mxu0 %v102
    %470 = vmatpush.msra.mxu0 %v98
    %471 = vmatpush.msra.mxu0 %v94
    %472 = vmatpush.msra.mxu0 %v90
    %473 = vmatpush.msra.mxu0 %v86
    %474 = vmatpush.msra.mxu0 %v82
    %475 = vmatpush.msra.mxu0 %v78
    %476 = vmatmul.f32.gmra.mxu0 %v395
    %v477 = vpop.f32.mrf.mxu0
    %v478 = vadd.f32 0.0, %v477
    %479 = vdwg.mxu0
    %v484 = vrot.slane %v438, 7
    %v485 = vrot.slane %v458, 6
    %v486 = vrot.slane %v478, 5
    %v487 = vsel %vm226, %v418, %v484
    %v488 = vsel %vm228, %v485, %v486
    %v489 = vsel %vm230, %v487, %v488
    %v491 = vadd.f32 %v399, %v489
    %v492 = vxor.u32 %v491, 2147483648
    %v493 = vmul.f32 %v492, 1.442695
    %v494 = vpow.pop %v493
    %v495 = vadd.f32 %v494, 1.0
    %v496 = vrcp.pop %v495
    %v497 = vmul.f32 %v495, %v496
    %v498 = vsub.f32 1.0, %v497
    %v499 = vmul.f32 %v496, %v498
    %v500 = vadd.f32 %v496, %v499
    %vm501 = vweird.f32 %v495
    %vm502 = vweird.f32 %v496
    %vm503 = vmor %vm501, %vm502
    %v504 = vsel %vm503, %v496, %v500
    %v505 = vand.u32 2147483647, %v495
    %vm506 = vcmp.eq.f32.partialorder %v505, 8.507059e+37
    %v507 = vand.u32 %v495, 2147483648
    %v508 = vor.u32 1.1754944e-38, %v507
    %v509 = vsel %vm506, %v508, %v504
    %v510 = vmul.f32 1.0, %v509
    %v512 = vrot.slane %v491, 3
    %v514 = vtanh.pop %v512
    %v516 = vrot.slane %v510, 1
    %v518 = vmul.f32 %v516, %v391
    %v519 = vmul.f32 %v510, %v514
    %v520 = vadd.f32 %v518, %v519
    %v521 = vtanh.pop %v520
    %v522 = vrot.slane %v510, 2
    %v524 = vmul.f32 %v522, %v521
    %s525 = sld [smem:[#allocation3 + $0x3]]
    %v526 = vstv %s525
    %v527 = vmul.f32 %v526, %v69
    %v528 = vadd.f32 %v527, %v70
    %529 = vmatpush.msra.mxu0 %v135
    %530 = vmatpush.msra.mxu0 %v131
    %531 = vmatpush.msra.mxu0 %v127
    %532 = vmatpush.msra.mxu0 %v123
    %533 = vmatpush.msra.mxu0 %v119
    %534 = vmatpush.msra.mxu0 %v115
    %535 = vmatpush.msra.mxu0 %v111
    %536 = vmatpush.msra.mxu0 %v107
    %537 = vmatpush.msra.mxu0 %v103
    %538 = vmatpush.msra.mxu0 %v99
    %539 = vmatpush.msra.mxu0 %v95
    %540 = vmatpush.msra.mxu0 %v91
    %541 = vmatpush.msra.mxu0 %v87
    %542 = vmatpush.msra.mxu0 %v83
    %543 = vmatpush.msra.mxu0 %v79
    %544 = vmatpush.msra.mxu0 %v75
    %545 = vmatmul.f32.gmra.mxu0 %v524
    %v546 = vpop.f32.mrf.mxu0
    %v547 = vadd.f32 0.0, %v546
    %548 = vdwg.mxu0
    %549 = vmatpush.msra.mxu0 %v136
    %550 = vmatpush.msra.mxu0 %v132
    %551 = vmatpush.msra.mxu0 %v128
    %552 = vmatpush.msra.mxu0 %v124
    %553 = vmatpush.msra.mxu0 %v120
    %554 = vmatpush.msra.mxu0 %v116
    %555 = vmatpush.msra.mxu0 %v112
    %556 = vmatpush.msra.mxu0 %v108
    %557 = vmatpush.msra.mxu0 %v104
    %558 = vmatpush.msra.mxu0 %v100
    %559 = vmatpush.msra.mxu0 %v96
    %560 = vmatpush.msra.mxu0 %v92
    %561 = vmatpush.msra.mxu0 %v88
    %562 = vmatpush.msra.mxu0 %v84
    %563 = vmatpush.msra.mxu0 %v80
    %564 = vmatpush.msra.mxu0 %v76
    %565 = vmatmul.f32.gmra.mxu0 %v524
    %v566 = vpop.f32.mrf.mxu0
    %v567 = vadd.f32 0.0, %v566
    %568 = vdwg.mxu0
    %569 = vmatpush.msra.mxu0 %v137
    %570 = vmatpush.msra.mxu0 %v133
    %571 = vmatpush.msra.mxu0 %v129
    %572 = vmatpush.msra.mxu0 %v125
    %573 = vmatpush.msra.mxu0 %v121
    %574 = vmatpush.msra.mxu0 %v117
    %575 = vmatpush.msra.mxu0 %v113
    %576 = vmatpush.msra.mxu0 %v109
    %577 = vmatpush.msra.mxu0 %v105
    %578 = vmatpush.msra.mxu0 %v101
    %579 = vmatpush.msra.mxu0 %v97
    %580 = vmatpush.msra.mxu0 %v93
    %581 = vmatpush.msra.mxu0 %v89
    %582 = vmatpush.msra.mxu0 %v85
    %583 = vmatpush.msra.mxu0 %v81
    %584 = vmatpush.msra.mxu0 %v77
    %585 = vmatmul.f32.gmra.mxu0 %v524
    %v586 = vpop.f32.mrf.mxu0
    %v587 = vadd.f32 0.0, %v586
    %588 = vdwg.mxu0
    %589 = vmatpush.msra.mxu0 %v138
    %590 = vmatpush.msra.mxu0 %v134
    %591 = vmatpush.msra.mxu0 %v130
    %592 = vmatpush.msra.mxu0 %v126
    %593 = vmatpush.msra.mxu0 %v122
    %594 = vmatpush.msra.mxu0 %v118
    %595 = vmatpush.msra.mxu0 %v114
    %596 = vmatpush.msra.mxu0 %v110
    %597 = vmatpush.msra.mxu0 %v106
    %598 = vmatpush.msra.mxu0 %v102
    %599 = vmatpush.msra.mxu0 %v98
    %600 = vmatpush.msra.mxu0 %v94
    %601 = vmatpush.msra.mxu0 %v90
    %602 = vmatpush.msra.mxu0 %v86
    %603 = vmatpush.msra.mxu0 %v82
    %604 = vmatpush.msra.mxu0 %v78
    %605 = vmatmul.f32.gmra.mxu0 %v524
    %v606 = vpop.f32.mrf.mxu0
    %v607 = vadd.f32 0.0, %v606
    %608 = vdwg.mxu0
    %v613 = vrot.slane %v567, 7
    %v614 = vrot.slane %v587, 6
    %v615 = vrot.slane %v607, 5
    %v616 = vsel %vm226, %v547, %v613
    %v617 = vsel %vm228, %v614, %v615
    %v618 = vsel %vm230, %v616, %v617
    %v620 = vadd.f32 %v528, %v618
    %v621 = vxor.u32 %v620, 2147483648
    %v622 = vmul.f32 %v621, 1.442695
    %v623 = vpow.pop %v622
    %v624 = vadd.f32 %v623, 1.0
    %v625 = vrcp.pop %v624
    %v626 = vmul.f32 %v624, %v625
    %v627 = vsub.f32 1.0, %v626
    %v628 = vmul.f32 %v625, %v627
    %v629 = vadd.f32 %v625, %v628
    %vm630 = vweird.f32 %v624
    %vm631 = vweird.f32 %v625
    %vm632 = vmor %vm630, %vm631
    %v633 = vsel %vm632, %v625, %v629
    %v634 = vand.u32 2147483647, %v624
    %vm635 = vcmp.eq.f32.partialorder %v634, 8.507059e+37
    %v636 = vand.u32 %v624, 2147483648
    %v637 = vor.u32 1.1754944e-38, %v636
    %v638 = vsel %vm635, %v637, %v633
    %v639 = vmul.f32 1.0, %v638
    %v641 = vrot.slane %v620, 3
    %v643 = vtanh.pop %v641
    %v645 = vrot.slane %v639, 1
    %v647 = vmul.f32 %v645, %v520
    %v648 = vmul.f32 %v639, %v643
    %v649 = vadd.f32 %v647, %v648
    %v650 = vtanh.pop %v649
    %v651 = vrot.slane %v639, 2
    %v653 = vmul.f32 %v651, %v650
    %s654 = sld [smem:[#allocation3 + $0x4]]
    %v655 = vstv %s654
    %v656 = vmul.f32 %v655, %v69
    %v657 = vadd.f32 %v656, %v70
    %658 = vmatpush.msra.mxu0 %v135
    %659 = vmatpush.msra.mxu0 %v131
    %660 = vmatpush.msra.mxu0 %v127
    %661 = vmatpush.msra.mxu0 %v123
    %662 = vmatpush.msra.mxu0 %v119
    %663 = vmatpush.msra.mxu0 %v115
    %664 = vmatpush.msra.mxu0 %v111
    %665 = vmatpush.msra.mxu0 %v107
    %666 = vmatpush.msra.mxu0 %v103
    %667 = vmatpush.msra.mxu0 %v99
    %668 = vmatpush.msra.mxu0 %v95
    %669 = vmatpush.msra.mxu0 %v91
    %670 = vmatpush.msra.mxu0 %v87
    %671 = vmatpush.msra.mxu0 %v83
    %672 = vmatpush.msra.mxu0 %v79
    %673 = vmatpush.msra.mxu0 %v75
    %674 = vmatmul.f32.gmra.mxu0 %v653
    %v675 = vpop.f32.mrf.mxu0
    %v676 = vadd.f32 0.0, %v675
    %677 = vdwg.mxu0
    %678 = vmatpush.msra.mxu0 %v136
    %679 = vmatpush.msra.mxu0 %v132
    %680 = vmatpush.msra.mxu0 %v128
    %681 = vmatpush.msra.mxu0 %v124
    %682 = vmatpush.msra.mxu0 %v120
    %683 = vmatpush.msra.mxu0 %v116
    %684 = vmatpush.msra.mxu0 %v112
    %685 = vmatpush.msra.mxu0 %v108
    %686 = vmatpush.msra.mxu0 %v104
    %687 = vmatpush.msra.mxu0 %v100
    %688 = vmatpush.msra.mxu0 %v96
    %689 = vmatpush.msra.mxu0 %v92
    %690 = vmatpush.msra.mxu0 %v88
    %691 = vmatpush.msra.mxu0 %v84
    %692 = vmatpush.msra.mxu0 %v80
    %693 = vmatpush.msra.mxu0 %v76
    %694 = vmatmul.f32.gmra.mxu0 %v653
    %v695 = vpop.f32.mrf.mxu0
    %v696 = vadd.f32 0.0, %v695
    %697 = vdwg.mxu0
    %698 = vmatpush.msra.mxu0 %v137
    %699 = vmatpush.msra.mxu0 %v133
    %700 = vmatpush.msra.mxu0 %v129
    %701 = vmatpush.msra.mxu0 %v125
    %702 = vmatpush.msra.mxu0 %v121
    %703 = vmatpush.msra.mxu0 %v117
    %704 = vmatpush.msra.mxu0 %v113
    %705 = vmatpush.msra.mxu0 %v109
    %706 = vmatpush.msra.mxu0 %v105
    %707 = vmatpush.msra.mxu0 %v101
    %708 = vmatpush.msra.mxu0 %v97
    %709 = vmatpush.msra.mxu0 %v93
    %710 = vmatpush.msra.mxu0 %v89
    %711 = vmatpush.msra.mxu0 %v85
    %712 = vmatpush.msra.mxu0 %v81
    %713 = vmatpush.msra.mxu0 %v77
    %714 = vmatmul.f32.gmra.mxu0 %v653
    %v715 = vpop.f32.mrf.mxu0
    %v716 = vadd.f32 0.0, %v715
    %717 = vdwg.mxu0
    %718 = vmatpush.msra.mxu0 %v138
    %719 = vmatpush.msra.mxu0 %v134
    %720 = vmatpush.msra.mxu0 %v130
    %721 = vmatpush.msra.mxu0 %v126
    %722 = vmatpush.msra.mxu0 %v122
    %723 = vmatpush.msra.mxu0 %v118
    %724 = vmatpush.msra.mxu0 %v114
    %725 = vmatpush.msra.mxu0 %v110
    %726 = vmatpush.msra.mxu0 %v106
    %727 = vmatpush.msra.mxu0 %v102
    %728 = vmatpush.msra.mxu0 %v98
    %729 = vmatpush.msra.mxu0 %v94
    %730 = vmatpush.msra.mxu0 %v90
    %731 = vmatpush.msra.mxu0 %v86
    %732 = vmatpush.msra.mxu0 %v82
    %733 = vmatpush.msra.mxu0 %v78
    %734 = vmatmul.f32.gmra.mxu0 %v653
    %v735 = vpop.f32.mrf.mxu0
    %v736 = vadd.f32 0.0, %v735
    %737 = vdwg.mxu0
    %v742 = vrot.slane %v696, 7
    %v743 = vrot.slane %v716, 6
    %v744 = vrot.slane %v736, 5
    %v745 = vsel %vm226, %v676, %v742
    %v746 = vsel %vm228, %v743, %v744
    %v747 = vsel %vm230, %v745, %v746
    %v749 = vadd.f32 %v657, %v747
    %v750 = vxor.u32 %v749, 2147483648
    %v751 = vmul.f32 %v750, 1.442695
    %v752 = vpow.pop %v751
    %v753 = vadd.f32 %v752, 1.0
    %v754 = vrcp.pop %v753
    %v755 = vmul.f32 %v753, %v754
    %v756 = vsub.f32 1.0, %v755
    %v757 = vmul.f32 %v754, %v756
    %v758 = vadd.f32 %v754, %v757
    %vm759 = vweird.f32 %v753
    %vm760 = vweird.f32 %v754
    %vm761 = vmor %vm759, %vm760
    %v762 = vsel %vm761, %v754, %v758
    %v763 = vand.u32 2147483647, %v753
    %vm764 = vcmp.eq.f32.partialorder %v763, 8.507059e+37
    %v765 = vand.u32 %v753, 2147483648
    %v766 = vor.u32 1.1754944e-38, %v765
    %v767 = vsel %vm764, %v766, %v762
    %v768 = vmul.f32 1.0, %v767
    %v770 = vrot.slane %v749, 3
    %v772 = vtanh.pop %v770
    %v774 = vrot.slane %v768, 1
    %v776 = vmul.f32 %v774, %v649
    %v777 = vmul.f32 %v768, %v772
    %v778 = vadd.f32 %v776, %v777
    %v779 = vtanh.pop %v778
    %v780 = vrot.slane %v768, 2
    %v782 = vmul.f32 %v780, %v779
    %s783 = sld [smem:[#allocation3 + $0x5]]
    %v784 = vstv %s783
    %v785 = vmul.f32 %v784, %v69
    %v786 = vadd.f32 %v785, %v70
    %787 = vmatpush.msra.mxu0 %v135
    %788 = vmatpush.msra.mxu0 %v131
    %789 = vmatpush.msra.mxu0 %v127
    %790 = vmatpush.msra.mxu0 %v123
    %791 = vmatpush.msra.mxu0 %v119
    %792 = vmatpush.msra.mxu0 %v115
    %793 = vmatpush.msra.mxu0 %v111
    %794 = vmatpush.msra.mxu0 %v107
    %795 = vmatpush.msra.mxu0 %v103
    %796 = vmatpush.msra.mxu0 %v99
    %797 = vmatpush.msra.mxu0 %v95
    %798 = vmatpush.msra.mxu0 %v91
    %799 = vmatpush.msra.mxu0 %v87
    %800 = vmatpush.msra.mxu0 %v83
    %801 = vmatpush.msra.mxu0 %v79
    %802 = vmatpush.msra.mxu0 %v75
    %803 = vmatmul.f32.gmra.mxu0 %v782
    %v804 = vpop.f32.mrf.mxu0
    %v805 = vadd.f32 0.0, %v804
    %806 = vdwg.mxu0
    %807 = vmatpush.msra.mxu0 %v136
    %808 = vmatpush.msra.mxu0 %v132
    %809 = vmatpush.msra.mxu0 %v128
    %810 = vmatpush.msra.mxu0 %v124
    %811 = vmatpush.msra.mxu0 %v120
    %812 = vmatpush.msra.mxu0 %v116
    %813 = vmatpush.msra.mxu0 %v112
    %814 = vmatpush.msra.mxu0 %v108
    %815 = vmatpush.msra.mxu0 %v104
    %816 = vmatpush.msra.mxu0 %v100
    %817 = vmatpush.msra.mxu0 %v96
    %818 = vmatpush.msra.mxu0 %v92
    %819 = vmatpush.msra.mxu0 %v88
    %820 = vmatpush.msra.mxu0 %v84
    %821 = vmatpush.msra.mxu0 %v80
    %822 = vmatpush.msra.mxu0 %v76
    %823 = vmatmul.f32.gmra.mxu0 %v782
    %v824 = vpop.f32.mrf.mxu0
    %v825 = vadd.f32 0.0, %v824
    %826 = vdwg.mxu0
    %827 = vmatpush.msra.mxu0 %v137
    %828 = vmatpush.msra.mxu0 %v133
    %829 = vmatpush.msra.mxu0 %v129
    %830 = vmatpush.msra.mxu0 %v125
    %831 = vmatpush.msra.mxu0 %v121
    %832 = vmatpush.msra.mxu0 %v117
    %833 = vmatpush.msra.mxu0 %v113
    %834 = vmatpush.msra.mxu0 %v109
    %835 = vmatpush.msra.mxu0 %v105
    %836 = vmatpush.msra.mxu0 %v101
    %837 = vmatpush.msra.mxu0 %v97
    %838 = vmatpush.msra.mxu0 %v93
    %839 = vmatpush.msra.mxu0 %v89
    %840 = vmatpush.msra.mxu0 %v85
    %841 = vmatpush.msra.mxu0 %v81
    %842 = vmatpush.msra.mxu0 %v77
    %843 = vmatmul.f32.gmra.mxu0 %v782
    %v844 = vpop.f32.mrf.mxu0
    %v845 = vadd.f32 0.0, %v844
    %846 = vdwg.mxu0
    %847 = vmatpush.msra.mxu0 %v138
    %848 = vmatpush.msra.mxu0 %v134
    %849 = vmatpush.msra.mxu0 %v130
    %850 = vmatpush.msra.mxu0 %v126
    %851 = vmatpush.msra.mxu0 %v122
    %852 = vmatpush.msra.mxu0 %v118
    %853 = vmatpush.msra.mxu0 %v114
    %854 = vmatpush.msra.mxu0 %v110
    %855 = vmatpush.msra.mxu0 %v106
    %856 = vmatpush.msra.mxu0 %v102
    %857 = vmatpush.msra.mxu0 %v98
    %858 = vmatpush.msra.mxu0 %v94
    %859 = vmatpush.msra.mxu0 %v90
    %860 = vmatpush.msra.mxu0 %v86
    %861 = vmatpush.msra.mxu0 %v82
    %862 = vmatpush.msra.mxu0 %v78
    %863 = vmatmul.f32.gmra.mxu0 %v782
    %v864 = vpop.f32.mrf.mxu0
    %v865 = vadd.f32 0.0, %v864
    %866 = vdwg.mxu0
    %v871 = vrot.slane %v825, 7
    %v872 = vrot.slane %v845, 6
    %v873 = vrot.slane %v865, 5
    %v874 = vsel %vm226, %v805, %v871
    %v875 = vsel %vm228, %v872, %v873
    %v876 = vsel %vm230, %v874, %v875
    %v878 = vadd.f32 %v786, %v876
    %v879 = vxor.u32 %v878, 2147483648
    %v880 = vmul.f32 %v879, 1.442695
    %v881 = vpow.pop %v880
    %v882 = vadd.f32 %v881, 1.0
    %v883 = vrcp.pop %v882
    %v884 = vmul.f32 %v882, %v883
    %v885 = vsub.f32 1.0, %v884
    %v886 = vmul.f32 %v883, %v885
    %v887 = vadd.f32 %v883, %v886
    %vm888 = vweird.f32 %v882
    %vm889 = vweird.f32 %v883
    %vm890 = vmor %vm888, %vm889
    %v891 = vsel %vm890, %v883, %v887
    %v892 = vand.u32 2147483647, %v882
    %vm893 = vcmp.eq.f32.partialorder %v892, 8.507059e+37
    %v894 = vand.u32 %v882, 2147483648
    %v895 = vor.u32 1.1754944e-38, %v894
    %v896 = vsel %vm893, %v895, %v891
    %v897 = vmul.f32 1.0, %v896
    %v899 = vrot.slane %v878, 3
    %v901 = vtanh.pop %v899
    %v903 = vrot.slane %v897, 1
    %v905 = vmul.f32 %v903, %v778
    %v906 = vmul.f32 %v897, %v901
    %v907 = vadd.f32 %v905, %v906
    %v908 = vtanh.pop %v907
    %v909 = vrot.slane %v897, 2
    %v911 = vmul.f32 %v909, %v908
    %s912 = sld [smem:[#allocation3 + $0x6]]
    %v913 = vstv %s912
    %v914 = vmul.f32 %v913, %v69
    %v915 = vadd.f32 %v914, %v70
    %916 = vmatpush.msra.mxu0 %v135
    %917 = vmatpush.msra.mxu0 %v131
    %918 = vmatpush.msra.mxu0 %v127
    %919 = vmatpush.msra.mxu0 %v123
    %920 = vmatpush.msra.mxu0 %v119
    %921 = vmatpush.msra.mxu0 %v115
    %922 = vmatpush.msra.mxu0 %v111
    %923 = vmatpush.msra.mxu0 %v107
    %924 = vmatpush.msra.mxu0 %v103
    %925 = vmatpush.msra.mxu0 %v99
    %926 = vmatpush.msra.mxu0 %v95
    %927 = vmatpush.msra.mxu0 %v91
    %928 = vmatpush.msra.mxu0 %v87
    %929 = vmatpush.msra.mxu0 %v83
    %930 = vmatpush.msra.mxu0 %v79
    %931 = vmatpush.msra.mxu0 %v75
    %932 = vmatmul.f32.gmra.mxu0 %v911
    %v933 = vpop.f32.mrf.mxu0
    %v934 = vadd.f32 0.0, %v933
    %935 = vdwg.mxu0
    %936 = vmatpush.msra.mxu0 %v136
    %937 = vmatpush.msra.mxu0 %v132
    %938 = vmatpush.msra.mxu0 %v128
    %939 = vmatpush.msra.mxu0 %v124
    %940 = vmatpush.msra.mxu0 %v120
    %941 = vmatpush.msra.mxu0 %v116
    %942 = vmatpush.msra.mxu0 %v112
    %943 = vmatpush.msra.mxu0 %v108
    %944 = vmatpush.msra.mxu0 %v104
    %945 = vmatpush.msra.mxu0 %v100
    %946 = vmatpush.msra.mxu0 %v96
    %947 = vmatpush.msra.mxu0 %v92
    %948 = vmatpush.msra.mxu0 %v88
    %949 = vmatpush.msra.mxu0 %v84
    %950 = vmatpush.msra.mxu0 %v80
    %951 = vmatpush.msra.mxu0 %v76
    %952 = vmatmul.f32.gmra.mxu0 %v911
    %v953 = vpop.f32.mrf.mxu0
    %v954 = vadd.f32 0.0, %v953
    %955 = vdwg.mxu0
    %956 = vmatpush.msra.mxu0 %v137
    %957 = vmatpush.msra.mxu0 %v133
    %958 = vmatpush.msra.mxu0 %v129
    %959 = vmatpush.msra.mxu0 %v125
    %960 = vmatpush.msra.mxu0 %v121
    %961 = vmatpush.msra.mxu0 %v117
    %962 = vmatpush.msra.mxu0 %v113
    %963 = vmatpush.msra.mxu0 %v109
    %964 = vmatpush.msra.mxu0 %v105
    %965 = vmatpush.msra.mxu0 %v101
    %966 = vmatpush.msra.mxu0 %v97
    %967 = vmatpush.msra.mxu0 %v93
    %968 = vmatpush.msra.mxu0 %v89
    %969 = vmatpush.msra.mxu0 %v85
    %970 = vmatpush.msra.mxu0 %v81
    %971 = vmatpush.msra.mxu0 %v77
    %972 = vmatmul.f32.gmra.mxu0 %v911
    %v973 = vpop.f32.mrf.mxu0
    %v974 = vadd.f32 0.0, %v973
    %975 = vdwg.mxu0
    %976 = vmatpush.msra.mxu0 %v138
    %977 = vmatpush.msra.mxu0 %v134
    %978 = vmatpush.msra.mxu0 %v130
    %979 = vmatpush.msra.mxu0 %v126
    %980 = vmatpush.msra.mxu0 %v122
    %981 = vmatpush.msra.mxu0 %v118
    %982 = vmatpush.msra.mxu0 %v114
    %983 = vmatpush.msra.mxu0 %v110
    %984 = vmatpush.msra.mxu0 %v106
    %985 = vmatpush.msra.mxu0 %v102
    %986 = vmatpush.msra.mxu0 %v98
    %987 = vmatpush.msra.mxu0 %v94
    %988 = vmatpush.msra.mxu0 %v90
    %989 = vmatpush.msra.mxu0 %v86
    %990 = vmatpush.msra.mxu0 %v82
    %991 = vmatpush.msra.mxu0 %v78
    %992 = vmatmul.f32.gmra.mxu0 %v911
    %v993 = vpop.f32.mrf.mxu0
    %v994 = vadd.f32 0.0, %v993
    %995 = vdwg.mxu0
    %v1000 = vrot.slane %v954, 7
    %v1001 = vrot.slane %v974, 6
    %v1002 = vrot.slane %v994, 5
    %v1003 = vsel %vm226, %v934, %v1000
    %v1004 = vsel %vm228, %v1001, %v1002
    %v1005 = vsel %vm230, %v1003, %v1004
    %v1007 = vadd.f32 %v915, %v1005
    %v1008 = vxor.u32 %v1007, 2147483648
    %v1009 = vmul.f32 %v1008, 1.442695
    %v1010 = vpow.pop %v1009
    %v1011 = vadd.f32 %v1010, 1.0
    %v1012 = vrcp.pop %v1011
    %v1013 = vmul.f32 %v1011, %v1012
    %v1014 = vsub.f32 1.0, %v1013
    %v1015 = vmul.f32 %v1012, %v1014
    %v1016 = vadd.f32 %v1012, %v1015
    %vm1017 = vweird.f32 %v1011
    %vm1018 = vweird.f32 %v1012
    %vm1019 = vmor %vm1017, %vm1018
    %v1020 = vsel %vm1019, %v1012, %v1016
    %v1021 = vand.u32 2147483647, %v1011
    %vm1022 = vcmp.eq.f32.partialorder %v1021, 8.507059e+37
    %v1023 = vand.u32 %v1011, 2147483648
    %v1024 = vor.u32 1.1754944e-38, %v1023
    %v1025 = vsel %vm1022, %v1024, %v1020
    %v1026 = vmul.f32 1.0, %v1025
    %v1028 = vrot.slane %v1007, 3
    %v1030 = vtanh.pop %v1028
    %v1032 = vrot.slane %v1026, 1
    %v1034 = vmul.f32 %v1032, %v907
    %v1035 = vmul.f32 %v1026, %v1030
    %v1036 = vadd.f32 %v1034, %v1035
    %v1037 = vtanh.pop %v1036
    %v1038 = vrot.slane %v1026, 2
    %v1040 = vmul.f32 %v1038, %v1037
    %s1041 = sld [smem:[#allocation3 + $0x7]]
    %v1042 = vstv %s1041
    %v1043 = vmul.f32 %v1042, %v69
    %v1044 = vadd.f32 %v1043, %v70
    %1045 = vmatpush.msra.mxu0 %v135
    %1046 = vmatpush.msra.mxu0 %v131
    %1047 = vmatpush.msra.mxu0 %v127
    %1048 = vmatpush.msra.mxu0 %v123
    %1049 = vmatpush.msra.mxu0 %v119
    %1050 = vmatpush.msra.mxu0 %v115
    %1051 = vmatpush.msra.mxu0 %v111
    %1052 = vmatpush.msra.mxu0 %v107
    %1053 = vmatpush.msra.mxu0 %v103
    %1054 = vmatpush.msra.mxu0 %v99
    %1055 = vmatpush.msra.mxu0 %v95
    %1056 = vmatpush.msra.mxu0 %v91
    %1057 = vmatpush.msra.mxu0 %v87
    %1058 = vmatpush.msra.mxu0 %v83
    %1059 = vmatpush.msra.mxu0 %v79
    %1060 = vmatpush.msra.mxu0 %v75
    %1061 = vmatmul.f32.gmra.mxu0 %v1040
    %v1062 = vpop.f32.mrf.mxu0
    %v1063 = vadd.f32 0.0, %v1062
    %1064 = vdwg.mxu0
    %1065 = vmatpush.msra.mxu0 %v136
    %1066 = vmatpush.msra.mxu0 %v132
    %1067 = vmatpush.msra.mxu0 %v128
    %1068 = vmatpush.msra.mxu0 %v124
    %1069 = vmatpush.msra.mxu0 %v120
    %1070 = vmatpush.msra.mxu0 %v116
    %1071 = vmatpush.msra.mxu0 %v112
    %1072 = vmatpush.msra.mxu0 %v108
    %1073 = vmatpush.msra.mxu0 %v104
    %1074 = vmatpush.msra.mxu0 %v100
    %1075 = vmatpush.msra.mxu0 %v96
    %1076 = vmatpush.msra.mxu0 %v92
    %1077 = vmatpush.msra.mxu0 %v88
    %1078 = vmatpush.msra.mxu0 %v84
    %1079 = vmatpush.msra.mxu0 %v80
    %1080 = vmatpush.msra.mxu0 %v76
    %1081 = vmatmul.f32.gmra.mxu0 %v1040
    %v1082 = vpop.f32.mrf.mxu0
    %v1083 = vadd.f32 0.0, %v1082
    %1084 = vdwg.mxu0
    %1085 = vmatpush.msra.mxu0 %v137
    %1086 = vmatpush.msra.mxu0 %v133
    %1087 = vmatpush.msra.mxu0 %v129
    %1088 = vmatpush.msra.mxu0 %v125
    %1089 = vmatpush.msra.mxu0 %v121
    %1090 = vmatpush.msra.mxu0 %v117
    %1091 = vmatpush.msra.mxu0 %v113
    %1092 = vmatpush.msra.mxu0 %v109
    %1093 = vmatpush.msra.mxu0 %v105
    %1094 = vmatpush.msra.mxu0 %v101
    %1095 = vmatpush.msra.mxu0 %v97
    %1096 = vmatpush.msra.mxu0 %v93
    %1097 = vmatpush.msra.mxu0 %v89
    %1098 = vmatpush.msra.mxu0 %v85
    %1099 = vmatpush.msra.mxu0 %v81
    %1100 = vmatpush.msra.mxu0 %v77
    %1101 = vmatmul.f32.gmra.mxu0 %v1040
    %v1102 = vpop.f32.mrf.mxu0
    %v1103 = vadd.f32 0.0, %v1102
    %1104 = vdwg.mxu0
    %1105 = vmatpush.msra.mxu0 %v138
    %1106 = vmatpush.msra.mxu0 %v134
    %1107 = vmatpush.msra.mxu0 %v130
    %1108 = vmatpush.msra.mxu0 %v126
    %1109 = vmatpush.msra.mxu0 %v122
    %1110 = vmatpush.msra.mxu0 %v118
    %1111 = vmatpush.msra.mxu0 %v114
    %1112 = vmatpush.msra.mxu0 %v110
    %1113 = vmatpush.msra.mxu0 %v106
    %1114 = vmatpush.msra.mxu0 %v102
    %1115 = vmatpush.msra.mxu0 %v98
    %1116 = vmatpush.msra.mxu0 %v94
    %1117 = vmatpush.msra.mxu0 %v90
    %1118 = vmatpush.msra.mxu0 %v86
    %1119 = vmatpush.msra.mxu0 %v82
    %1120 = vmatpush.msra.mxu0 %v78
    %1121 = vmatmul.f32.gmra.mxu0 %v1040
    %v1122 = vpop.f32.mrf.mxu0
    %v1123 = vadd.f32 0.0, %v1122
    %1124 = vdwg.mxu0
    %v1129 = vrot.slane %v1083, 7
    %v1130 = vrot.slane %v1103, 6
    %v1131 = vrot.slane %v1123, 5
    %v1132 = vsel %vm226, %v1063, %v1129
    %v1133 = vsel %vm228, %v1130, %v1131
    %v1134 = vsel %vm230, %v1132, %v1133
    %v1136 = vadd.f32 %v1044, %v1134
    %v1137 = vxor.u32 %v1136, 2147483648
    %v1138 = vmul.f32 %v1137, 1.442695
    %v1139 = vpow.pop %v1138
    %v1140 = vadd.f32 %v1139, 1.0
    %v1141 = vrcp.pop %v1140
    %v1142 = vmul.f32 %v1140, %v1141
    %v1143 = vsub.f32 1.0, %v1142
    %v1144 = vmul.f32 %v1141, %v1143
    %v1145 = vadd.f32 %v1141, %v1144
    %vm1146 = vweird.f32 %v1140
    %vm1147 = vweird.f32 %v1141
    %vm1148 = vmor %vm1146, %vm1147
    %v1149 = vsel %vm1148, %v1141, %v1145
    %v1150 = vand.u32 2147483647, %v1140
    %vm1151 = vcmp.eq.f32.partialorder %v1150, 8.507059e+37
    %v1152 = vand.u32 %v1140, 2147483648
    %v1153 = vor.u32 1.1754944e-38, %v1152
    %v1154 = vsel %vm1151, %v1153, %v1149
    %v1155 = vmul.f32 1.0, %v1154
    %v1157 = vrot.slane %v1136, 3
    %v1159 = vtanh.pop %v1157
    %v1161 = vrot.slane %v1155, 1
    %v1163 = vmul.f32 %v1161, %v1036
    %v1164 = vmul.f32 %v1155, %v1159
    %v1165 = vadd.f32 %v1163, %v1164
    %v1166 = vtanh.pop %v1165
    %v1167 = vrot.slane %v1155, 2
    %v1169 = vmul.f32 %v1167, %v1166
    %v1170 = vld [vmem:[%s4] sm:$0x1]
    %v1171 = vmul.f32 %v1169, %v1170
    %v1172 = vsel %vm226, %v1171, 0.0
    %1173 = vadd.xlane.f32.xlu0 %v1172
    %v1174 = vpop.xlane.xlu0 %1173
    %v1175 = vld [vmem:[#allocation2] sm:$0x1]
    %v1176 = vadd.f32 %v1174, %v1175
    %vm1177 = vcmask 0
    %1178 = vst.msk [vmem:[#allocation10] sm:$0x1] %vm1177, %v1176
    // Predicated region
    $region38: #{tpu_custom_call.1} parent=1 // pred_check
      _
    $region39: #{tpu_custom_call.1} parent=1 // pred_check_branch
      %1180 = sbr.rel (0) target = $region41
    $region40: #{tpu_custom_call.1} parent=1 // pred_region
      %1182 = vsyncadd [#allocation5], 0
      %s1184 = sshll.u32 [#allocation10], 4
      %s1185 = int_to_ptr.vmem [resolvable:$true] %s1184
      %s1186 = sshll.u32 %s6, 4
      %s1187 = int_to_ptr.hbm [resolvable:$true] %s1186
      %1189 = dma.vmem_to_hbm [thread:$0]  %s1185, 16, %s1187, [#allocation5]
    $region41: #{tpu_custom_call.1} parent=1 // pred_fallthru
      _
    // Predicated region
    $region42: #{tpu_custom_call.1} parent=1 // pred_check
      _
    $region43: #{tpu_custom_call.1} parent=1 // pred_check_branch
      %1191 = sbr.rel (0) target = $region45
    $region44: #{tpu_custom_call.1} parent=1 // pred_region
      %1193 = dma.done [#allocation5], 16
    $region45: #{tpu_custom_call.1} parent=1 // pred_fallthru
      _
    %1194 = vsyncpa [#allocation4], 1
    %1195 = vsyncpa [#allocation9], 1
    %1196 = vsyncpa [#allocation5], 1
    %1197 = vsyncpa [#allocation6], 1

</llo_original>
